<compile_context>
chip_gen: v7x
topology: tpu7x:2x2x1
jax: 0.10.0
libtpu: 0.0.40
codegen_flags: <defaults>
</compile_context>

<pallas_src>
import jax
import jax.numpy as jnp
from jax.experimental import pallas as pl
from jax.experimental.pallas import tpu as pltpu

HIDDEN = 64
OUT = 2
HIDDEN_PAD = 128   # lane-dense hidden width (cols 64..127 are zero weights)
OUT_PAD = 128      # lane-dense logits width (cols 2..127 are zero, trimmed later)


def _round_up(x, m):
    return (x + m - 1) // m * m


# ----------------------------------------------------------------------------
# Fused MLP kernel: fc1 -> ReLU -> fc2 -> ReLU -> fc3 on one batch-row tile.
# ----------------------------------------------------------------------------
def _mlp_kernel(x_ref, w1_ref, b1_ref, w2_ref, b2_ref, w3_ref, b3_ref, o_ref):
    h = jnp.dot(x_ref[...], w1_ref[...], preferred_element_type=jnp.float32)
    h = jnp.maximum(h + b1_ref[...], 0.0)
    # TODO(synk): nn.Dropout(0.1) treated as identity (inference semantics).
    h = jnp.dot(h.astype(jnp.bfloat16), w2_ref[...], preferred_element_type=jnp.float32)
    h = jnp.maximum(h + b2_ref[...], 0.0)
    # TODO(synk): second nn.Dropout(0.1) also identity at inference.
    out = jnp.dot(h.astype(jnp.bfloat16), w3_ref[...], preferred_element_type=jnp.float32)
    o_ref[...] = (out + b3_ref[...]).astype(o_ref.dtype)


# ----------------------------------------------------------------------------
# Parameters (torch-like Linear init), then a one-time layout/packing step.
# ----------------------------------------------------------------------------
def init_params(key, n_feats):
    """Torch layout: weight (out_features, in_features), bias (out_features,)."""
    ks = jax.random.split(key, 6)

    def u(k, shape, fan_in):
        bound = 1.0 / jnp.sqrt(float(fan_in))
        return jax.random.uniform(k, shape, jnp.float32, -bound, bound)

    return {
        "fc1_w": u(ks[0], (HIDDEN, n_feats), n_feats),
        "fc1_b": u(ks[1], (HIDDEN,), n_feats),
        "fc2_w": u(ks[2], (HIDDEN, HIDDEN), HIDDEN),
        "fc2_b": u(ks[3], (HIDDEN,), HIDDEN),
        "fc3_w": u(ks[4], (OUT, HIDDEN), HIDDEN),
        "fc3_b": u(ks[5], (OUT,), HIDDEN),
    }


def pack_params(params):
    """One-time prep: transpose to (K, N), zero-pad to lane-dense 128 widths,
    cast MXU operands to bf16; biases stay f32 for the f32 epilogue."""
    def pad2(a, shape):
        return jnp.zeros(shape, a.dtype).at[: a.shape[0], : a.shape[1]].set(a)

    n_feats = params["fc1_w"].shape[1]
    w1 = pad2(params["fc1_w"].T, (n_feats, HIDDEN_PAD))
    w2 = pad2(params["fc2_w"].T, (HIDDEN_PAD, HIDDEN_PAD))
    w3 = pad2(params["fc3_w"].T, (HIDDEN_PAD, OUT_PAD))
    b1 = jnp.zeros((1, HIDDEN_PAD), jnp.float32).at[0, :HIDDEN].set(params["fc1_b"])
    b2 = jnp.zeros((1, HIDDEN_PAD), jnp.float32).at[0, :HIDDEN].set(params["fc2_b"])
    b3 = jnp.zeros((1, OUT_PAD), jnp.float32).at[0, :OUT].set(params["fc3_b"])
    return {
        "w1": w1.astype(jnp.bfloat16), "b1": b1,
        "w2": w2.astype(jnp.bfloat16), "b2": b2,
        "w3": w3.astype(jnp.bfloat16), "b3": b3,
    }


# ----------------------------------------------------------------------------
# Forward pass: x (B, n_feats) f32 -> logits (B, 2) f32 (same as BoMLP.forward)
# ----------------------------------------------------------------------------
def bomlp_forward(packed, x):
    B, F = x.shape
    TM = min(512, _round_up(B, 8))          # row tile: multiple of 8, bounded
    M_pad = _round_up(B, TM)
    grid = (M_pad // TM,)

    # bf16 MXU operand; pad rows so the grid tiles evenly (extra rows trimmed).
    x_p = jnp.zeros((M_pad, F), jnp.bfloat16).at[:B, :].set(x.astype(jnp.bfloat16))

    w1, w2, w3 = packed["w1"], packed["w2"], packed["w3"]
    b1, b2, b3 = packed["b1"], packed["b2"], packed["b3"]

    flops = 2 * M_pad * (F * HIDDEN_PAD + HIDDEN_PAD * HIDDEN_PAD + HIDDEN_PAD * OUT_PAD)
    bytes_accessed = (x_p.size * 2
                      + (w1.size + w2.size + w3.size) * 2
                      + (b1.size + b2.size + b3.size) * 4
                      + M_pad * OUT_PAD * 4)

    out = pl.pallas_call(
        _mlp_kernel,
        grid=grid,
        out_shape=jax.ShapeDtypeStruct((M_pad, OUT_PAD), jnp.float32),
        in_specs=[
            pl.BlockSpec((TM, F), lambda i: (i, 0)),                  # x tile
            pl.BlockSpec((F, HIDDEN_PAD), lambda i: (0, 0)),          # w1 (grid-invariant)
            pl.BlockSpec((1, HIDDEN_PAD), lambda i: (0, 0)),          # b1
            pl.BlockSpec((HIDDEN_PAD, HIDDEN_PAD), lambda i: (0, 0)), # w2
            pl.BlockSpec((1, HIDDEN_PAD), lambda i: (0, 0)),          # b2
            pl.BlockSpec((HIDDEN_PAD, OUT_PAD), lambda i: (0, 0)),    # w3
            pl.BlockSpec((1, OUT_PAD), lambda i: (0, 0)),             # b3
        ],
        out_specs=pl.BlockSpec((TM, OUT_PAD), lambda i: (i, 0)),      # lane-dense store
        compiler_params=pltpu.CompilerParams(
            dimension_semantics=("parallel",),      # megacore-shardable batch axis
            vmem_limit_bytes=32 * 1024 * 1024,
        ),
        cost_estimate=pl.CostEstimate(
            flops=flops, transcendentals=0, bytes_accessed=bytes_accessed),
    )(x_p, w1, b1, w2, b2, w3, b3)

    # Note: BoMLP.forward returns raw logits (CrossEntropyLoss is unused there).
    return out[:B, :OUT]


if __name__ == "__main__":
    key = jax.random.PRNGKey(0)
    pkey, xkey = jax.random.split(key)

    n_feats = 32
    batch = 8

    params = init_params(pkey, n_feats)
    packed = pack_params(params)                      # one-time layout prep
    x = jax.random.normal(xkey, (batch, n_feats), dtype=jnp.float32)

    logits = jax.jit(bomlp_forward)(packed, x)
    logits = jax.block_until_ready(logits)

    assert logits.shape == (batch, 2), logits.shape
    assert bool(jnp.all(jnp.isfinite(logits)))
    print("KERNEL_OK")
</pallas_src>

<mosaic_0001>
module attributes {stable_mosaic.version = 11 : i64} {
  func.func @_mlp_kernel(%arg0: i32, %arg1: memref<8x32xbf16, #tpu.memory_space<vmem>>, %arg2: memref<32x128xbf16, #tpu.memory_space<vmem>>, %arg3: memref<1x128xf32, #tpu.memory_space<vmem>>, %arg4: memref<128x128xbf16, #tpu.memory_space<vmem>>, %arg5: memref<1x128xf32, #tpu.memory_space<vmem>>, %arg6: memref<128x128xbf16, #tpu.memory_space<vmem>>, %arg7: memref<1x128xf32, #tpu.memory_space<vmem>>, %arg8: memref<8x128xf32, #tpu.memory_space<vmem>>) attributes {dimension_semantics = [#tpu.dimension_semantics<parallel>], iteration_bounds = array<i64: 1>, scalar_prefetch = 0 : i64, scratch_operands = 0 : i64, tpu.core_type = #tpu.core_type<tc>, window_params = [{transform_indices = @transform_0, window_bounds = array<i64: 8, 32>}, {pipeline_mode = #tpu.pipeline_mode<synchronous>, transform_indices = @transform_1, window_bounds = array<i64: 32, 128>}, {pipeline_mode = #tpu.pipeline_mode<synchronous>, transform_indices = @transform_2, window_bounds = array<i64: 1, 128>}, {pipeline_mode = #tpu.pipeline_mode<synchronous>, transform_indices = @transform_3, window_bounds = array<i64: 128, 128>}, {pipeline_mode = #tpu.pipeline_mode<synchronous>, transform_indices = @transform_4, window_bounds = array<i64: 1, 128>}, {pipeline_mode = #tpu.pipeline_mode<synchronous>, transform_indices = @transform_5, window_bounds = array<i64: 128, 128>}, {pipeline_mode = #tpu.pipeline_mode<synchronous>, transform_indices = @transform_6, window_bounds = array<i64: 1, 128>}, {transform_indices = @transform_7, window_bounds = array<i64: 8, 128>}]} {
    %c0 = arith.constant 0 : index
    %c0_0 = arith.constant 0 : index
    %0 = vector.load %arg1[%c0, %c0_0] : memref<8x32xbf16, #tpu.memory_space<vmem>>, vector<8x32xbf16>
    %c0_1 = arith.constant 0 : index
    %c0_2 = arith.constant 0 : index
    %1 = vector.load %arg2[%c0_1, %c0_2] : memref<32x128xbf16, #tpu.memory_space<vmem>>, vector<32x128xbf16>
    %cst = arith.constant dense<0.000000e+00> : vector<8x128xf32>
    %2 = tpu.matmul %0, %1, %cst {dimension_numbers = #tpu.dot_dimension_numbers<[1], [0], [0], [1], [0, 0, 1, 1], [], []>} : vector<8x32xbf16>, vector<32x128xbf16>, vector<8x128xf32> -> vector<8x128xf32>
    %c0_3 = arith.constant 0 : index
    %c0_4 = arith.constant 0 : index
    %3 = vector.load %arg3[%c0_3, %c0_4] : memref<1x128xf32, #tpu.memory_space<vmem>>, vector<1x128xf32>
    %4 = vector.broadcast %3 : vector<1x128xf32> to vector<8x128xf32>
    %5 = arith.addf %2, %4 : vector<8x128xf32>
    %cst_5 = arith.constant 0.000000e+00 : f32
    %6 = vector.broadcast %cst_5 : f32 to vector<8x128xf32>
    %7 = arith.maximumf %5, %6 : vector<8x128xf32>
    %8 = arith.truncf %7 : vector<8x128xf32> to vector<8x128xbf16>
    %c0_6 = arith.constant 0 : index
    %c0_7 = arith.constant 0 : index
    %9 = vector.load %arg4[%c0_6, %c0_7] : memref<128x128xbf16, #tpu.memory_space<vmem>>, vector<128x128xbf16>
    %cst_8 = arith.constant dense<0.000000e+00> : vector<8x128xf32>
    %10 = tpu.matmul %8, %9, %cst_8 {dimension_numbers = #tpu.dot_dimension_numbers<[1], [0], [0], [1], [0, 0, 1, 1], [], []>} : vector<8x128xbf16>, vector<128x128xbf16>, vector<8x128xf32> -> vector<8x128xf32>
    %c0_9 = arith.constant 0 : index
    %c0_10 = arith.constant 0 : index
    %11 = vector.load %arg5[%c0_9, %c0_10] : memref<1x128xf32, #tpu.memory_space<vmem>>, vector<1x128xf32>
    %12 = vector.broadcast %11 : vector<1x128xf32> to vector<8x128xf32>
    %13 = arith.addf %10, %12 : vector<8x128xf32>
    %cst_11 = arith.constant 0.000000e+00 : f32
    %14 = vector.broadcast %cst_11 : f32 to vector<8x128xf32>
    %15 = arith.maximumf %13, %14 : vector<8x128xf32>
    %16 = arith.truncf %15 : vector<8x128xf32> to vector<8x128xbf16>
    %c0_12 = arith.constant 0 : index
    %c0_13 = arith.constant 0 : index
    %17 = vector.load %arg6[%c0_12, %c0_13] : memref<128x128xbf16, #tpu.memory_space<vmem>>, vector<128x128xbf16>
    %cst_14 = arith.constant dense<0.000000e+00> : vector<8x128xf32>
    %18 = tpu.matmul %16, %17, %cst_14 {dimension_numbers = #tpu.dot_dimension_numbers<[1], [0], [0], [1], [0, 0, 1, 1], [], []>} : vector<8x128xbf16>, vector<128x128xbf16>, vector<8x128xf32> -> vector<8x128xf32>
    %c0_15 = arith.constant 0 : index
    %c0_16 = arith.constant 0 : index
    %19 = vector.load %arg7[%c0_15, %c0_16] : memref<1x128xf32, #tpu.memory_space<vmem>>, vector<1x128xf32>
    %20 = vector.broadcast %19 : vector<1x128xf32> to vector<8x128xf32>
    %21 = arith.addf %18, %20 : vector<8x128xf32>
    %c0_17 = arith.constant 0 : index
    %c0_18 = arith.constant 0 : index
    %22 = vector.load %arg8[%c0_17, %c0_18] : memref<8x128xf32, #tpu.memory_space<vmem>>, vector<8x128xf32>
    tpu.vector_store %arg8[%c0_17, %c0_18], %21 {strides = array<i32>} : memref<8x128xf32, #tpu.memory_space<vmem>>, vector<8x128xf32>,
    return
  }
  func.func @transform_0(%arg0: i32) -> (i32, i32) {
    %c0_i32 = arith.constant 0 : i32
    %c0_i32_0 = arith.constant 0 : i32
    return %arg0, %c0_i32 : i32, i32
  }
  func.func @transform_1(%arg0: i32) -> (i32, i32) {
    %c0_i32 = arith.constant 0 : i32
    %c0_i32_0 = arith.constant 0 : i32
    %c0_i32_1 = arith.constant 0 : i32
    return %c0_i32, %c0_i32_0 : i32, i32
  }
  func.func @transform_2(%arg0: i32) -> (i32, i32) {
    %c0_i32 = arith.constant 0 : i32
    %c0_i32_0 = arith.constant 0 : i32
    %c0_i32_1 = arith.constant 0 : i32
    return %c0_i32, %c0_i32_0 : i32, i32
  }
  func.func @transform_3(%arg0: i32) -> (i32, i32) {
    %c0_i32 = arith.constant 0 : i32
    %c0_i32_0 = arith.constant 0 : i32
    %c0_i32_1 = arith.constant 0 : i32
    return %c0_i32, %c0_i32_0 : i32, i32
  }
  func.func @transform_4(%arg0: i32) -> (i32, i32) {
    %c0_i32 = arith.constant 0 : i32
    %c0_i32_0 = arith.constant 0 : i32
    %c0_i32_1 = arith.constant 0 : i32
    return %c0_i32, %c0_i32_0 : i32, i32
  }
  func.func @transform_5(%arg0: i32) -> (i32, i32) {
    %c0_i32 = arith.constant 0 : i32
    %c0_i32_0 = arith.constant 0 : i32
    %c0_i32_1 = arith.constant 0 : i32
    return %c0_i32, %c0_i32_0 : i32, i32
  }
  func.func @transform_6(%arg0: i32) -> (i32, i32) {
    %c0_i32 = arith.constant 0 : i32
    %c0_i32_0 = arith.constant 0 : i32
    %c0_i32_1 = arith.constant 0 : i32
    return %c0_i32, %c0_i32_0 : i32, i32
  }
  func.func @transform_7(%arg0: i32) -> (i32, i32) {
    %c0_i32 = arith.constant 0 : i32
    %c0_i32_0 = arith.constant 0 : i32
    return %arg0, %c0_i32 : i32, i32
  }
}

</mosaic_0001>

<llo_original>
// kernel: bomlp_forward.1
$region0: #{bomlp_forward.1}
  #allocation0 [shape = 'u32[]', space=smem, size = 0x4, offset = 0x4, fixed_abs, tag = 'smem constant byte address 0x4 - core index']
  #allocation1 [shape = 'u32[144,128]{1,0:T(1,128)}', space=vmem, size = 0x12000, scoped, tag = 'internal scratch']
  %s0 = inlined_call_operand.vmem [shape: bf16[8,32], index: 0, kind: input, shape index: {}]
  %s1 = inlined_call_operand.vmem [shape: bf16[32,128], index: 1, kind: input, shape index: {}]
  %s2 = inlined_call_operand.vmem [shape: f32[1,128], index: 2, kind: input, shape index: {}]
  %s3 = inlined_call_operand.hbm [shape: bf16[128,128], index: 3, kind: input, shape index: {}]
  %s4 = inlined_call_operand.vmem [shape: f32[1,128], index: 4, kind: input, shape index: {}]
  %s5 = inlined_call_operand.hbm [shape: bf16[128,128], index: 5, kind: input, shape index: {}]
  %s6 = inlined_call_operand.vmem [shape: f32[1,128], index: 6, kind: input, shape index: {}]
  %s7 = inlined_call_operand.vmem [shape: f32[8,128], index: 7, kind: output, shape index: {}]
  %s8 = sld [smem:[#allocation0]]
  $region46: #{bomlp_forward.1} parent=0
    _
  %s10 = ssub.s32 1, %s8
  %s11 = scalar_select 0, %s10, %s8
  $region1: #{bomlp_forward.1} parent=0
    #allocation2 [shape = 'u8[32768]{0}', space=vmem, size = 0x8000, scoped, tag = 'input window, operand 3, single buffered']
    #allocation3 [shape = 's32[1]{0}', space=sflag, size = 0x4, scoped, tag = 'scoped memory for bomlp_forward.1']
    #allocation4 [shape = 'u8[32768]{0}', space=vmem, size = 0x8000, scoped, tag = 'input window, operand 5, single buffered']
    #allocation5 [shape = 's32[1]{0}', space=sflag, size = 0x4, scoped, tag = 'scoped memory for bomlp_forward.1']
    %12 = vsyncpa [#allocation3], 0
    %13 = vsyncpa [#allocation5], 0
    // Predicated region
    $region2: #{bomlp_forward.1} parent=1 // pred_check
      _
    $region3: #{bomlp_forward.1} parent=1 // pred_check_branch
      %15 = sbr.rel (0) target = $region5
    $region4: #{bomlp_forward.1} parent=1 // pred_region
      _
    $region5: #{bomlp_forward.1} parent=1 // pred_fallthru
      _
    // Predicated region
    $region6: #{bomlp_forward.1} parent=1 // pred_check
      _
    $region7: #{bomlp_forward.1} parent=1 // pred_check_branch
      %17 = sbr.rel (0) target = $region9
    $region8: #{bomlp_forward.1} parent=1 // pred_region
      _
    $region9: #{bomlp_forward.1} parent=1 // pred_fallthru
      _
    // Predicated region
    $region10: #{bomlp_forward.1} parent=1 // pred_check
      _
    $region11: #{bomlp_forward.1} parent=1 // pred_check_branch
      %19 = sbr.rel (0) target = $region13
    $region12: #{bomlp_forward.1} parent=1 // pred_region
      _
    $region13: #{bomlp_forward.1} parent=1 // pred_fallthru
      _
    // Predicated region
    $region14: #{bomlp_forward.1} parent=1 // pred_check
      _
    $region15: #{bomlp_forward.1} parent=1 // pred_check_branch
      %21 = sbr.rel (0) target = $region17
    $region16: #{bomlp_forward.1} parent=1 // pred_region
      %s23 = ssub.s32 1024, 1024
      %24 = vsyncadd [#allocation3], %s23
      %s25 = sshll.u32 [#allocation2], 4
      %s26 = int_to_ptr.vmem [resolvable:$true] %s25
      %31 = dma.hbm_to_vmem [thread:$0]  %s3, 1024, %s26, [#allocation3], 64, 64, 4
    $region17: #{bomlp_forward.1} parent=1 // pred_fallthru
      _
    // Predicated region
    $region18: #{bomlp_forward.1} parent=1 // pred_check
      _
    $region19: #{bomlp_forward.1} parent=1 // pred_check_branch
      %33 = sbr.rel (0) target = $region21
    $region20: #{bomlp_forward.1} parent=1 // pred_region
      _
    $region21: #{bomlp_forward.1} parent=1 // pred_fallthru
      _
    // Predicated region
    $region22: #{bomlp_forward.1} parent=1 // pred_check
      _
    $region23: #{bomlp_forward.1} parent=1 // pred_check_branch
      %35 = sbr.rel (0) target = $region25
    $region24: #{bomlp_forward.1} parent=1 // pred_region
      %s37 = ssub.s32 1024, 1024
      %38 = vsyncadd [#allocation5], %s37
      %s39 = sshll.u32 [#allocation4], 4
      %s40 = int_to_ptr.vmem [resolvable:$true] %s39
      %45 = dma.hbm_to_vmem [thread:$0]  %s5, 1024, %s40, [#allocation5], 64, 64, 4
    $region25: #{bomlp_forward.1} parent=1 // pred_fallthru
      _
    // Predicated region
    $region26: #{bomlp_forward.1} parent=1 // pred_check
      _
    $region27: #{bomlp_forward.1} parent=1 // pred_check_branch
      %47 = sbr.rel (0) target = $region29
    $region28: #{bomlp_forward.1} parent=1 // pred_region
      _
    $region29: #{bomlp_forward.1} parent=1 // pred_fallthru
      _
    // Predicated region
    $region30: #{bomlp_forward.1} parent=1 // pred_check
      _
    $region31: #{bomlp_forward.1} parent=1 // pred_check_branch
      %49 = sbr.rel (0) target = $region33
    $region32: #{bomlp_forward.1} parent=1 // pred_region
      %50 = dma.done [#allocation3], 1024
    $region33: #{bomlp_forward.1} parent=1 // pred_fallthru
      _
    // Predicated region
    $region34: #{bomlp_forward.1} parent=1 // pred_check
      _
    $region35: #{bomlp_forward.1} parent=1 // pred_check_branch
      %52 = sbr.rel (0) target = $region37
    $region36: #{bomlp_forward.1} parent=1 // pred_region
      %53 = dma.done [#allocation5], 1024
    $region37: #{bomlp_forward.1} parent=1 // pred_fallthru
      _
    %v55 = vld [vmem:[%s0] sm:$0xf]
    %v56 = vld [vmem:[%s1] sm:$0xf]
    %v57 = vld [vmem:[%s1 + $0x4] sm:$0xf]
    %v58 = vld [vmem:[%s1 + $0x8] sm:$0xf]
    %v59 = vld [vmem:[%s1 + $0xc] sm:$0xf]
    %v60 = vld [vmem:[%s2] sm:$0x1]
    %v62 = vlaneseq
    %v63 = vshrl.u32 %v62, 7
    %v64 = vsub.s32 0, %v63
    %v65 = vrot.slane %v60, %v64
    %v71 = vunpack.c.l.b16 %v56
    %v72 = vunpack.c.l.b16 %v57
    %v73 = vunpack.c.l.b16 %v58
    %v74 = vunpack.c.l.b16 %v59
    %v75 = vpack.c.b16 %v72, %v71
    %v76 = vpack.c.b16 %v74, %v73
    %vm79 = vcmask 261120
    %v81 = vsel %vm79, %v55, 0
    %83 = vmatprep.subr.bf16.mxu0 0
    %84 = vmatpush1.bf16.msra.mxu0 %v75
    %85 = vmatprep.subr.bf16.mxu0 0
    %86 = vmatpush1.bf16.msra.mxu0 %v76
    %87 = vmatprep.subr.bf16.mxu0 0
    %88 = vmatpush1.bf16.msra.mxu0 0
    %89 = vmatprep.subr.bf16.mxu0 0
    %90 = vmatpush1.bf16.msra.mxu0 0
    %91 = vmatprep.subr.bf16.mxu0 0
    %92 = vmatpush1.bf16.msra.mxu0 0
    %93 = vmatprep.subr.bf16.mxu0 0
    %94 = vmatpush1.bf16.msra.mxu0 0
    %95 = vmatprep.subr.bf16.mxu0 0
    %96 = vmatpush1.bf16.msra.mxu0 0
    %97 = vmatprep.subr.bf16.mxu0 0
    %98 = vmatpush1.bf16.msra.mxu0 0
    %99 = vmatprep.subr.bf16.mxu0 0
    %100 = vmatpush1.bf16.msra.mxu0 0
    %101 = vmatprep.subr.bf16.mxu0 0
    %102 = vmatpush1.bf16.msra.mxu0 0
    %103 = vmatprep.subr.bf16.mxu0 0
    %104 = vmatpush1.bf16.msra.mxu0 0
    %105 = vmatprep.subr.bf16.mxu0 0
    %106 = vmatpush1.bf16.msra.mxu0 0
    %107 = vmatprep.subr.bf16.mxu0 0
    %108 = vmatpush1.bf16.msra.mxu0 0
    %109 = vmatprep.subr.bf16.mxu0 0
    %110 = vmatpush1.bf16.msra.mxu0 0
    %111 = vmatprep.subr.bf16.mxu0 0
    %112 = vmatpush1.bf16.msra.mxu0 0
    %113 = vmatprep.subr.bf16.mxu0 0
    %114 = vmatpush1.bf16.msra.mxu0 0
    %115 = vmatprep.mubr.bf16.mxu0 0
    %116 = vmatmul.mubr.bf16.gmra.mrb[0].mxu0 %v81
    %v117 = vpop.f32.mrb[0].mxu0
    %v118 = vadd.f32 %v65, %v117
    %v119 = vpop.f32.mrb[0].mxu0
    %v120 = vpop.f32.mrb[0].mxu0
    %v121 = vpop.f32.mrb[0].mxu0
    %122 = vdwg.mxu0
    %v123 = vmax.f32 %v118, 0.0
    %v124 = vpack.c.bf16 %v123, %v123
    %v125 = vld [vmem:[#allocation2] sm:$0xf]
    %v126 = vld [vmem:[#allocation2 + $0x4] sm:$0xf]
    %v127 = vld [vmem:[#allocation2 + $0x8] sm:$0xf]
    %v128 = vld [vmem:[#allocation2 + $0xc] sm:$0xf]
    %v129 = vld [vmem:[#allocation2 + $0x10] sm:$0xf]
    %v130 = vld [vmem:[#allocation2 + $0x14] sm:$0xf]
    %v131 = vld [vmem:[#allocation2 + $0x18] sm:$0xf]
    %v132 = vld [vmem:[#allocation2 + $0x1c] sm:$0xf]
    %v133 = vld [vmem:[#allocation2 + $0x20] sm:$0xf]
    %v134 = vld [vmem:[#allocation2 + $0x24] sm:$0xf]
    %v135 = vld [vmem:[#allocation2 + $0x28] sm:$0xf]
    %v136 = vld [vmem:[#allocation2 + $0x2c] sm:$0xf]
    %v137 = vld [vmem:[#allocation2 + $0x30] sm:$0xf]
    %v138 = vld [vmem:[#allocation2 + $0x34] sm:$0xf]
    %v139 = vld [vmem:[#allocation2 + $0x38] sm:$0xf]
    %v140 = vld [vmem:[#allocation2 + $0x3c] sm:$0xf]
    %v141 = vld [vmem:[%s4] sm:$0x1]
    %v143 = vlaneseq
    %v144 = vshrl.u32 %v143, 7
    %v145 = vsub.s32 0, %v144
    %v146 = vrot.slane %v141, %v145
    %v164 = vunpack.c.l.b16 %v125
    %v165 = vunpack.c.l.b16 %v126
    %v166 = vunpack.c.l.b16 %v127
    %v167 = vunpack.c.l.b16 %v128
    %v168 = vunpack.c.l.b16 %v129
    %v169 = vunpack.c.l.b16 %v130
    %v170 = vunpack.c.l.b16 %v131
    %v171 = vunpack.c.l.b16 %v132
    %v172 = vunpack.c.l.b16 %v133
    %v173 = vunpack.c.l.b16 %v134
    %v174 = vunpack.c.l.b16 %v135
    %v175 = vunpack.c.l.b16 %v136
    %v176 = vunpack.c.l.b16 %v137
    %v177 = vunpack.c.l.b16 %v138
    %v178 = vunpack.c.l.b16 %v139
    %v179 = vunpack.c.l.b16 %v140
    %v180 = vpack.c.b16 %v165, %v164
    %v181 = vpack.c.b16 %v167, %v166
    %v182 = vpack.c.b16 %v169, %v168
    %v183 = vpack.c.b16 %v171, %v170
    %v184 = vpack.c.b16 %v173, %v172
    %v185 = vpack.c.b16 %v175, %v174
    %v186 = vpack.c.b16 %v177, %v176
    %v187 = vpack.c.b16 %v179, %v178
    %196 = vmatprep.subr.bf16.mxu0 0
    %197 = vmatpush1.bf16.msra.mxu0 %v180
    %198 = vmatprep.subr.bf16.mxu0 0
    %199 = vmatpush1.bf16.msra.mxu0 %v181
    %200 = vmatprep.subr.bf16.mxu0 0
    %201 = vmatpush1.bf16.msra.mxu0 %v182
    %202 = vmatprep.subr.bf16.mxu0 0
    %203 = vmatpush1.bf16.msra.mxu0 %v183
    %204 = vmatprep.subr.bf16.mxu0 0
    %205 = vmatpush1.bf16.msra.mxu0 %v184
    %206 = vmatprep.subr.bf16.mxu0 0
    %207 = vmatpush1.bf16.msra.mxu0 %v185
    %208 = vmatprep.subr.bf16.mxu0 0
    %209 = vmatpush1.bf16.msra.mxu0 %v186
    %210 = vmatprep.subr.bf16.mxu0 0
    %211 = vmatpush1.bf16.msra.mxu0 %v187
    %212 = vmatprep.subr.bf16.mxu0 0
    %213 = vmatpush1.bf16.msra.mxu0 0
    %214 = vmatprep.subr.bf16.mxu0 0
    %215 = vmatpush1.bf16.msra.mxu0 0
    %216 = vmatprep.subr.bf16.mxu0 0
    %217 = vmatpush1.bf16.msra.mxu0 0
    %218 = vmatprep.subr.bf16.mxu0 0
    %219 = vmatpush1.bf16.msra.mxu0 0
    %220 = vmatprep.subr.bf16.mxu0 0
    %221 = vmatpush1.bf16.msra.mxu0 0
    %222 = vmatprep.subr.bf16.mxu0 0
    %223 = vmatpush1.bf16.msra.mxu0 0
    %224 = vmatprep.subr.bf16.mxu0 0
    %225 = vmatpush1.bf16.msra.mxu0 0
    %226 = vmatprep.subr.bf16.mxu0 0
    %227 = vmatpush1.bf16.msra.mxu0 0
    %228 = vmatprep.mubr.bf16.mxu0 0
    %229 = vmatmul.mubr.bf16.gmra.mrb[0].mxu0 %v124
    %v230 = vpop.f32.mrb[0].mxu0
    %v231 = vadd.f32 %v146, %v230
    %v232 = vpop.f32.mrb[0].mxu0
    %v233 = vpop.f32.mrb[0].mxu0
    %v234 = vpop.f32.mrb[0].mxu0
    %235 = vdwg.mxu0
    %v236 = vmax.f32 %v231, 0.0
    %v237 = vpack.c.bf16 %v236, %v236
    %v238 = vld [vmem:[#allocation4] sm:$0xf]
    %v239 = vld [vmem:[#allocation4 + $0x4] sm:$0xf]
    %v240 = vld [vmem:[#allocation4 + $0x8] sm:$0xf]
    %v241 = vld [vmem:[#allocation4 + $0xc] sm:$0xf]
    %v242 = vld [vmem:[#allocation4 + $0x10] sm:$0xf]
    %v243 = vld [vmem:[#allocation4 + $0x14] sm:$0xf]
    %v244 = vld [vmem:[#allocation4 + $0x18] sm:$0xf]
    %v245 = vld [vmem:[#allocation4 + $0x1c] sm:$0xf]
    %v246 = vld [vmem:[#allocation4 + $0x20] sm:$0xf]
    %v247 = vld [vmem:[#allocation4 + $0x24] sm:$0xf]
    %v248 = vld [vmem:[#allocation4 + $0x28] sm:$0xf]
    %v249 = vld [vmem:[#allocation4 + $0x2c] sm:$0xf]
    %v250 = vld [vmem:[#allocation4 + $0x30] sm:$0xf]
    %v251 = vld [vmem:[#allocation4 + $0x34] sm:$0xf]
    %v252 = vld [vmem:[#allocation4 + $0x38] sm:$0xf]
    %v253 = vld [vmem:[#allocation4 + $0x3c] sm:$0xf]
    %v254 = vld [vmem:[%s6] sm:$0x1]
    %v256 = vlaneseq
    %v257 = vshrl.u32 %v256, 7
    %v258 = vsub.s32 0, %v257
    %v259 = vrot.slane %v254, %v258
    %v277 = vunpack.c.l.b16 %v238
    %v278 = vunpack.c.l.b16 %v239
    %v279 = vunpack.c.l.b16 %v240
    %v280 = vunpack.c.l.b16 %v241
    %v281 = vunpack.c.l.b16 %v242
    %v282 = vunpack.c.l.b16 %v243
    %v283 = vunpack.c.l.b16 %v244
    %v284 = vunpack.c.l.b16 %v245
    %v285 = vunpack.c.l.b16 %v246
    %v286 = vunpack.c.l.b16 %v247
    %v287 = vunpack.c.l.b16 %v248
    %v288 = vunpack.c.l.b16 %v249
    %v289 = vunpack.c.l.b16 %v250
    %v290 = vunpack.c.l.b16 %v251
    %v291 = vunpack.c.l.b16 %v252
    %v292 = vunpack.c.l.b16 %v253
    %v293 = vpack.c.b16 %v278, %v277
    %v294 = vpack.c.b16 %v280, %v279
    %v295 = vpack.c.b16 %v282, %v281
    %v296 = vpack.c.b16 %v284, %v283
    %v297 = vpack.c.b16 %v286, %v285
    %v298 = vpack.c.b16 %v288, %v287
    %v299 = vpack.c.b16 %v290, %v289
    %v300 = vpack.c.b16 %v292, %v291
    %309 = vmatprep.subr.bf16.mxu0 0
    %310 = vmatpush1.bf16.msra.mxu0 %v293
    %311 = vmatprep.subr.bf16.mxu0 0
    %312 = vmatpush1.bf16.msra.mxu0 %v294
    %313 = vmatprep.subr.bf16.mxu0 0
    %314 = vmatpush1.bf16.msra.mxu0 %v295
    %315 = vmatprep.subr.bf16.mxu0 0
    %316 = vmatpush1.bf16.msra.mxu0 %v296
    %317 = vmatprep.subr.bf16.mxu0 0
    %318 = vmatpush1.bf16.msra.mxu0 %v297
    %319 = vmatprep.subr.bf16.mxu0 0
    %320 = vmatpush1.bf16.msra.mxu0 %v298
    %321 = vmatprep.subr.bf16.mxu0 0
    %322 = vmatpush1.bf16.msra.mxu0 %v299
    %323 = vmatprep.subr.bf16.mxu0 0
    %324 = vmatpush1.bf16.msra.mxu0 %v300
    %325 = vmatprep.subr.bf16.mxu0 0
    %326 = vmatpush1.bf16.msra.mxu0 0
    %327 = vmatprep.subr.bf16.mxu0 0
    %328 = vmatpush1.bf16.msra.mxu0 0
    %329 = vmatprep.subr.bf16.mxu0 0
    %330 = vmatpush1.bf16.msra.mxu0 0
    %331 = vmatprep.subr.bf16.mxu0 0
    %332 = vmatpush1.bf16.msra.mxu0 0
    %333 = vmatprep.subr.bf16.mxu0 0
    %334 = vmatpush1.bf16.msra.mxu0 0
    %335 = vmatprep.subr.bf16.mxu0 0
    %336 = vmatpush1.bf16.msra.mxu0 0
    %337 = vmatprep.subr.bf16.mxu0 0
    %338 = vmatpush1.bf16.msra.mxu0 0
    %339 = vmatprep.subr.bf16.mxu0 0
    %340 = vmatpush1.bf16.msra.mxu0 0
    %341 = vmatprep.mubr.bf16.mxu0 0
    %342 = vmatmul.mubr.bf16.gmra.mrb[0].mxu0 %v237
    %v343 = vpop.f32.mrb[0].mxu0
    %v344 = vadd.f32 %v259, %v343
    %v345 = vpop.f32.mrb[0].mxu0
    %v346 = vpop.f32.mrb[0].mxu0
    %v347 = vpop.f32.mrb[0].mxu0
    %348 = vdwg.mxu0
    %349 = vst [vmem:[%s7] sm:$0xff] %v344
    // Predicated region
    $region38: #{bomlp_forward.1} parent=1 // pred_check
      _
    $region39: #{bomlp_forward.1} parent=1 // pred_check_branch
      %351 = sbr.rel (0) target = $region41
    $region40: #{bomlp_forward.1} parent=1 // pred_region
      _
    $region41: #{bomlp_forward.1} parent=1 // pred_fallthru
      _
    // Predicated region
    $region42: #{bomlp_forward.1} parent=1 // pred_check
      _
    $region43: #{bomlp_forward.1} parent=1 // pred_check_branch
      %353 = sbr.rel (0) target = $region45
    $region44: #{bomlp_forward.1} parent=1 // pred_region
      _
    $region45: #{bomlp_forward.1} parent=1 // pred_fallthru
      _
    %354 = vsyncpa [#allocation3], 1
    %355 = vsyncpa [#allocation5], 1

</llo_original>
